<compile_context>
chip_gen: v7x
topology: tpu7x:2x2x1
jax: 0.10.0
libtpu: 0.0.40
codegen_flags: <defaults>
</compile_context>

<pallas_src>
import jax
import jax.numpy as jnp
from jax.experimental import pallas as pl
from jax.experimental.pallas import tpu as pltpu


def cont_lstm_delay_step_kernel(x_ref, cg_ref, h0_ref, c0_ref,
                                w_ref, u_ref, b_ref, out_ref,
                                h_s, dh_s, c_s, dc_s):
    """One ContLSTM-delay ODE step; grid axis 1 walks solver steps.

    x_ref  : (Bb, Ip)   x(t), zero-padded input channels
    cg_ref : (Bb, Ip)   dx/dt(t)  (dxdt.derivative(t))
    h0_ref : (Bb, H)    initial h (t==0 branch)
    c0_ref : (Bb, H)    initial c (t==0 branch)
    w_ref  : (Ip, 4H)   [W_i|W_f|W_o|W_c] (transposed, zero-padded rows), resident
    u_ref  : (H, 4H)    [U_i|U_f|U_o|U_c] (transposed), resident
    b_ref  : (1, 4H)    [b_i|b_f|b_o|b_c], resident
    out_ref: (Bb, 4H)   [dh/dt | h_t | c_t | dc/dt] for this step
    h_s, dh_s, c_s, dc_s : (Bb, H) f32 VMEM scratch carrying state across steps
    """
    H = h_s.shape[-1]
    H3 = 3 * H

    @pl.when(pl.program_id(1) == 0)
    def _init():
        # Module's t == 0 branch: h_past = h, c_past = c, d{h,c}_past/dt = 0.
        h_s[...] = h0_ref[...].astype(jnp.float32)
        c_s[...] = c0_ref[...].astype(jnp.float32)
        dh_s[...] = jnp.zeros_like(dh_s)
        dc_s[...] = jnp.zeros_like(dc_s)

    w = w_ref[...]
    u = u_ref[...]
    x = x_ref[...].astype(jnp.float32)
    cg = cg_ref[...].astype(jnp.float32)
    h_past = h_s[...]
    dhpast_dt = dh_s[...]
    c_past = c_s[...]
    dcpast_dt = dc_s[...]

    # Pre-activations A and their time derivative dA; the weight slabs stay
    # VMEM-resident across all steps (constant index_map), bias is one add.
    A = (jnp.dot(x, w, preferred_element_type=jnp.float32)
         + jnp.dot(h_past, u, preferred_element_type=jnp.float32)
         + b_ref[...])
    dA = (jnp.dot(cg, w, preferred_element_type=jnp.float32)
          + jnp.dot(dhpast_dt, u, preferred_element_type=jnp.float32))

    # Gate order [i, f, o, c]: sigmoid + its chain on a contiguous 3H slab,
    # tanh + its chain on the trailing H lanes (single EUP pass each).
    sg = jax.nn.sigmoid(A[:, :H3])
    c_tilde = jnp.tanh(A[:, H3:])
    dsg = sg * (1.0 - sg) * dA[:, :H3]
    dc_tilde_dt = (1.0 - c_tilde * c_tilde) * dA[:, H3:]

    i_t = sg[:, 0:H]
    f_t = sg[:, H:2 * H]
    o_t = sg[:, 2 * H:H3]
    didt = dsg[:, 0:H]
    dfdt = dsg[:, H:2 * H]
    dodt = dsg[:, 2 * H:H3]

    c_t = f_t * c_past + i_t * c_tilde
    tanh_c = jnp.tanh(c_t)
    h_t = o_t * tanh_c
    dc_dt = dfdt * c_past + f_t * dcpast_dt + didt * c_tilde + i_t * dc_tilde_dt
    dh_dt = dodt * tanh_c + o_t * (1.0 - tanh_c * tanh_c) * dc_dt

    # Carry next-step state in f32 scratch (never leaves VMEM between steps).
    h_s[...] = h_t
    dh_s[...] = dh_dt
    c_s[...] = c_t
    dc_s[...] = dc_dt

    # Single lane-dense (Bb, 4H) unmasked store.
    out_ref[...] = jnp.concatenate(
        [dh_dt, h_t, c_t, dc_dt], axis=-1).astype(out_ref.dtype)


def pack_params(W, U, b, *, sublane=8):
    """Pack per-gate params into lane-dense slabs, gate order [i, f, o, c].

    W[g]: (I, H) (x @ W[g], i.e. torch weight transposed), U[g]: (H, H),
    b[g]: (H,) (the U_* Linear biases; W_* have no bias).
    Returns (W_pad:(Ip,4H), U_all:(H,4H), b_all:(1,4H)) with I zero-padded to
    a multiple of `sublane`.  Do this once per solve.
    """
    order = ('i', 'f', 'o', 'c')
    W_all = jnp.concatenate([W[g] for g in order], axis=1)
    U_all = jnp.concatenate([U[g] for g in order], axis=1)
    b_all = jnp.concatenate([b[g] for g in order], axis=0)[None, :]
    I = W_all.shape[0]
    Ip = ((I + sublane - 1) // sublane) * sublane
    W_pad = jnp.zeros((Ip, W_all.shape[1]), W_all.dtype).at[:I, :].set(W_all)
    return W_pad, U_all, b_all


def pad_stream(xs, Ip):
    """Zero-pad the channel dim of a (T, B, I) stream to Ip (once per solve)."""
    T, B, I = xs.shape
    if I == Ip:
        return xs
    return jnp.zeros((T, B, Ip), xs.dtype).at[..., :I].set(xs)


def cont_lstm_delay_scan(xs, control_grads, h0, c0, w_pad, u_all, b_all,
                         *, batch_block=None, vmem_limit_bytes=None):
    """Run the whole solver step loop in one pallas_call.

    xs, control_grads : (T, B, Ip)  x(t) and dx/dt(t) per step (channel-padded)
    h0, c0            : (B, H)      initial state (module's t==0 branch)
    w_pad, u_all, b_all: output of pack_params()
    batch_block       : trajectories per grid block (multiple of 8); on v7x use
                        B//2 so both TensorCores run half the trajectories.
    Returns per-step (dh_dt, h_t, c_t, dc_dt), each (T, B, H); dh_dt[t] is the
    module's forward() output at step t.  Single-step forward == T = 1.
    """
    T, Bt, Ip = xs.shape
    B, H = h0.shape
    assert Bt == B
    Bb = B if batch_block is None else batch_block
    assert B % Bb == 0 and (Bb == B or Bb % 8 == 0)
    NB = B // Bb

    out = pl.pallas_call(
        cont_lstm_delay_step_kernel,
        out_shape=jax.ShapeDtypeStruct((T, B, 4 * H), h0.dtype),
        grid_spec=pltpu.PrefetchScalarGridSpec(
            num_scalar_prefetch=0,
            grid=(NB, T),
            in_specs=[
                pl.BlockSpec((None, Bb, Ip), lambda nb, t: (t, nb, 0)),   # x(t)
                pl.BlockSpec((None, Bb, Ip), lambda nb, t: (t, nb, 0)),   # dx/dt(t)
                pl.BlockSpec((Bb, H), lambda nb, t: (nb, 0)),             # h0
                pl.BlockSpec((Bb, H), lambda nb, t: (nb, 0)),             # c0
                pl.BlockSpec((Ip, 4 * H), lambda nb, t: (0, 0)),          # W (resident)
                pl.BlockSpec((H, 4 * H), lambda nb, t: (0, 0)),           # U (resident)
                pl.BlockSpec((1, 4 * H), lambda nb, t: (0, 0)),           # b (resident)
            ],
            out_specs=pl.BlockSpec((None, Bb, 4 * H), lambda nb, t: (t, nb, 0)),
            scratch_shapes=[pltpu.VMEM((Bb, H), jnp.float32)] * 4,
        ),
        compiler_params=pltpu.CompilerParams(
            dimension_semantics=("parallel", "arbitrary"),
            # At large H, budget VMEM explicitly (v7x: 64 MiB total, 32 MiB
            # scoped default; the resident weight slab counts once, streamed
            # blocks are double-buffered).
            vmem_limit_bytes=vmem_limit_bytes),
    )(xs, control_grads, h0, c0, w_pad, u_all, b_all)

    # Slice the packed slab once per solve (not per step).
    dh_dt = out[..., 0 * H:1 * H]
    h_t = out[..., 1 * H:2 * H]
    c_t = out[..., 2 * H:3 * H]
    dc_dt = out[..., 3 * H:4 * H]
    return dh_dt, h_t, c_t, dc_dt


def _reference_scan(xs, cgs, h0, c0, W, U, b):
    """Pure-JAX step-by-step reference of the module's forward recurrence."""
    mm = lambda a, m: jnp.dot(a, m, precision=jax.lax.Precision.HIGHEST)
    h_past, c_past = h0, c0
    dhpast = jnp.zeros_like(h0)
    dcpast = jnp.zeros_like(c0)
    outs = []
    for t in range(xs.shape[0]):
        x, cg = xs[t], cgs[t]
        i_t = jax.nn.sigmoid(mm(x, W['i']) + mm(h_past, U['i']) + b['i'])
        f_t = jax.nn.sigmoid(mm(x, W['f']) + mm(h_past, U['f']) + b['f'])
        c_tl = jnp.tanh(mm(x, W['c']) + mm(h_past, U['c']) + b['c'])
        o_t = jax.nn.sigmoid(mm(x, W['o']) + mm(h_past, U['o']) + b['o'])
        c_t = f_t * c_past + i_t * c_tl
        tanh_c = jnp.tanh(c_t)
        h_t = o_t * tanh_c
        dA = mm(cg, W['i']) + mm(dhpast, U['i'])
        dB = mm(cg, W['f']) + mm(dhpast, U['f'])
        dD = mm(cg, W['c']) + mm(dhpast, U['c'])
        dC = mm(cg, W['o']) + mm(dhpast, U['o'])
        didt = i_t * (1 - i_t) * dA
        dfdt = f_t * (1 - f_t) * dB
        dctdt = (1 - c_tl ** 2) * dD
        dodt = o_t * (1 - o_t) * dC
        dc_dt = dfdt * c_past + f_t * dcpast + didt * c_tl + i_t * dctdt
        dh_dt = dodt * tanh_c + o_t * (1 - tanh_c ** 2) * dc_dt
        outs.append((dh_dt, h_t, c_t, dc_dt))
        h_past, c_past, dhpast, dcpast = h_t, c_t, dh_dt, dc_dt
    return tuple(jnp.stack(z) for z in zip(*outs))


if __name__ == "__main__":
    import numpy as np

    B, I, H, T = 8, 4, 32, 16      # batch, input_channels, hidden_channels, steps
    key = jax.random.PRNGKey(0)
    ks = jax.random.split(key, 16)
    gates = ('i', 'f', 'o', 'c')

    # Deterministic parameter init (PyTorch Linear-style uniform bounds).
    w_bound = 1.0 / np.sqrt(I)
    u_bound = 1.0 / np.sqrt(H)
    W = {g: jax.random.uniform(ks[n], (I, H), jnp.float32, -w_bound, w_bound)
         for n, g in enumerate(gates)}
    U = {g: jax.random.uniform(ks[4 + n], (H, H), jnp.float32, -u_bound, u_bound)
         for n, g in enumerate(gates)}
    b = {g: jax.random.uniform(ks[8 + n], (H,), jnp.float32, -u_bound, u_bound)
         for n, g in enumerate(gates)}

    # Per-step x(t) and control_gradient = dxdt.derivative(t).
    xs = jax.random.normal(ks[12], (T, B, I), jnp.float32)
    cgs = jax.random.normal(ks[13], (T, B, I), jnp.float32)
    # t == 0 branch: h_past = h; c empty -> clamped randn c_past.
    h0 = jax.random.normal(ks[14], (B, H), jnp.float32)
    c0 = jnp.clip(jax.random.normal(ks[15], (B, H), jnp.float32), -1.0, 1.0)

    # Pack weights and pad the channel dim once per solve.
    w_pad, u_all, b_all = pack_params(W, U, b)
    Ip = w_pad.shape[0]
    xs_p = pad_stream(xs, Ip)
    cgs_p = pad_stream(cgs, Ip)

    scan = jax.jit(cont_lstm_delay_scan,
                   static_argnames=("batch_block", "vmem_limit_bytes"))
    dh_dt, h_t, c_t, dc_dt = scan(xs_p, cgs_p, h0, c0, w_pad, u_all, b_all)
    jax.block_until_ready(dh_dt)

    ref_dh, ref_h, ref_c, ref_dc = _reference_scan(xs, cgs, h0, c0, W, U, b)
    np.testing.assert_allclose(np.asarray(dh_dt), np.asarray(ref_dh),
                               rtol=5e-4, atol=5e-4)
    np.testing.assert_allclose(np.asarray(h_t), np.asarray(ref_h),
                               rtol=5e-4, atol=5e-4)
    np.testing.assert_allclose(np.asarray(c_t), np.asarray(ref_c),
                               rtol=5e-4, atol=5e-4)
    np.testing.assert_allclose(np.asarray(dc_dt), np.asarray(ref_dc),
                               rtol=5e-4, atol=5e-4)
    print("KERNEL_OK")
</pallas_src>

<mosaic_0001>
module attributes {stable_mosaic.version = 11 : i64} {
  func.func @cont_lstm_delay_step_kernel(%arg0: i32, %arg1: i32, %arg2: memref<1x8x8xf32, #tpu.memory_space<vmem>>, %arg3: memref<1x8x8xf32, #tpu.memory_space<vmem>>, %arg4: memref<8x32xf32, #tpu.memory_space<vmem>>, %arg5: memref<8x32xf32, #tpu.memory_space<vmem>>, %arg6: memref<8x128xf32, #tpu.memory_space<vmem>>, %arg7: memref<32x128xf32, #tpu.memory_space<vmem>>, %arg8: memref<1x128xf32, #tpu.memory_space<vmem>>, %arg9: memref<1x8x128xf32, #tpu.memory_space<vmem>>, %arg10: memref<8x32xf32, #tpu.memory_space<vmem>>, %arg11: memref<8x32xf32, #tpu.memory_space<vmem>>, %arg12: memref<8x32xf32, #tpu.memory_space<vmem>>, %arg13: memref<8x32xf32, #tpu.memory_space<vmem>>) attributes {dimension_semantics = [#tpu.dimension_semantics<parallel>, #tpu.dimension_semantics<arbitrary>], iteration_bounds = array<i64: 1, 16>, scalar_prefetch = 0 : i64, scratch_operands = 4 : i64, tpu.core_type = #tpu.core_type<tc>, window_params = [{transform_indices = @transform_0, window_bounds = array<i64: 1, 8, 8>}, {transform_indices = @transform_1, window_bounds = array<i64: 1, 8, 8>}, {transform_indices = @transform_2, window_bounds = array<i64: 8, 32>}, {transform_indices = @transform_3, window_bounds = array<i64: 8, 32>}, {pipeline_mode = #tpu.pipeline_mode<synchronous>, transform_indices = @transform_4, window_bounds = array<i64: 8, 128>}, {pipeline_mode = #tpu.pipeline_mode<synchronous>, transform_indices = @transform_5, window_bounds = array<i64: 32, 128>}, {pipeline_mode = #tpu.pipeline_mode<synchronous>, transform_indices = @transform_6, window_bounds = array<i64: 1, 128>}, {transform_indices = @transform_7, window_bounds = array<i64: 1, 8, 128>}]} {
    %c0_i32 = arith.constant 0 : i32
    %0 = arith.cmpi eq, %arg1, %c0_i32 : i32
    %1 = arith.extui %0 : i1 to i32
    %c0_i32_0 = arith.constant 0 : i32
    %2 = arith.cmpi ne, %1, %c0_i32_0 : i32
    scf.if %2 {
      %c0_38 = arith.constant 0 : index
      %c0_39 = arith.constant 0 : index
      %73 = vector.load %arg4[%c0_38, %c0_39] : memref<8x32xf32, #tpu.memory_space<vmem>>, vector<8x32xf32>
      %c0_40 = arith.constant 0 : index
      %c0_41 = arith.constant 0 : index
      %74 = vector.load %arg10[%c0_40, %c0_41] : memref<8x32xf32, #tpu.memory_space<vmem>>, vector<8x32xf32>
      tpu.vector_store %arg10[%c0_40, %c0_41], %73 {strides = array<i32>} : memref<8x32xf32, #tpu.memory_space<vmem>>, vector<8x32xf32>,
      %c0_42 = arith.constant 0 : index
      %c0_43 = arith.constant 0 : index
      %75 = vector.load %arg5[%c0_42, %c0_43] : memref<8x32xf32, #tpu.memory_space<vmem>>, vector<8x32xf32>
      %c0_44 = arith.constant 0 : index
      %c0_45 = arith.constant 0 : index
      %76 = vector.load %arg12[%c0_44, %c0_45] : memref<8x32xf32, #tpu.memory_space<vmem>>, vector<8x32xf32>
      tpu.vector_store %arg12[%c0_44, %c0_45], %75 {strides = array<i32>} : memref<8x32xf32, #tpu.memory_space<vmem>>, vector<8x32xf32>,
      %cst_46 = arith.constant 0.000000e+00 : f32
      %77 = vector.broadcast %cst_46 : f32 to vector<8x32xf32>
      %c0_47 = arith.constant 0 : index
      %c0_48 = arith.constant 0 : index
      %78 = vector.load %arg11[%c0_47, %c0_48] : memref<8x32xf32, #tpu.memory_space<vmem>>, vector<8x32xf32>
      tpu.vector_store %arg11[%c0_47, %c0_48], %77 {strides = array<i32>} : memref<8x32xf32, #tpu.memory_space<vmem>>, vector<8x32xf32>,
      %cst_49 = arith.constant 0.000000e+00 : f32
      %79 = vector.broadcast %cst_49 : f32 to vector<8x32xf32>
      %c0_50 = arith.constant 0 : index
      %c0_51 = arith.constant 0 : index
      %80 = vector.load %arg13[%c0_50, %c0_51] : memref<8x32xf32, #tpu.memory_space<vmem>>, vector<8x32xf32>
      tpu.vector_store %arg13[%c0_50, %c0_51], %79 {strides = array<i32>} : memref<8x32xf32, #tpu.memory_space<vmem>>, vector<8x32xf32>,
    } else {
    }
    %c0 = arith.constant 0 : index
    %c0_1 = arith.constant 0 : index
    %3 = vector.load %arg6[%c0, %c0_1] : memref<8x128xf32, #tpu.memory_space<vmem>>, vector<8x128xf32>
    %c0_2 = arith.constant 0 : index
    %c0_3 = arith.constant 0 : index
    %4 = vector.load %arg7[%c0_2, %c0_3] : memref<32x128xf32, #tpu.memory_space<vmem>>, vector<32x128xf32>
    %c0_4 = arith.constant 0 : index
    %c0_5 = arith.constant 0 : index
    %c0_6 = arith.constant 0 : index
    %5 = vector.load %arg2[%c0_4, %c0_5, %c0_6] : memref<1x8x8xf32, #tpu.memory_space<vmem>>, vector<1x8x8xf32>
    %6 = vector.shape_cast %5 : vector<1x8x8xf32> to vector<8x8xf32>
    %c0_7 = arith.constant 0 : index
    %c0_8 = arith.constant 0 : index
    %c0_9 = arith.constant 0 : index
    %7 = vector.load %arg3[%c0_7, %c0_8, %c0_9] : memref<1x8x8xf32, #tpu.memory_space<vmem>>, vector<1x8x8xf32>
    %8 = vector.shape_cast %7 : vector<1x8x8xf32> to vector<8x8xf32>
    %c0_10 = arith.constant 0 : index
    %c0_11 = arith.constant 0 : index
    %9 = vector.load %arg10[%c0_10, %c0_11] : memref<8x32xf32, #tpu.memory_space<vmem>>, vector<8x32xf32>
    %c0_12 = arith.constant 0 : index
    %c0_13 = arith.constant 0 : index
    %10 = vector.load %arg11[%c0_12, %c0_13] : memref<8x32xf32, #tpu.memory_space<vmem>>, vector<8x32xf32>
    %c0_14 = arith.constant 0 : index
    %c0_15 = arith.constant 0 : index
    %11 = vector.load %arg12[%c0_14, %c0_15] : memref<8x32xf32, #tpu.memory_space<vmem>>, vector<8x32xf32>
    %c0_16 = arith.constant 0 : index
    %c0_17 = arith.constant 0 : index
    %12 = vector.load %arg13[%c0_16, %c0_17] : memref<8x32xf32, #tpu.memory_space<vmem>>, vector<8x32xf32>
    %cst = arith.constant dense<0.000000e+00> : vector<8x128xf32>
    %13 = tpu.matmul %6, %3, %cst {dimension_numbers = #tpu.dot_dimension_numbers<[1], [0], [0], [1], [0, 0, 1, 1], [], []>} : vector<8x8xf32>, vector<8x128xf32>, vector<8x128xf32> -> vector<8x128xf32>
    %cst_18 = arith.constant dense<0.000000e+00> : vector<8x128xf32>
    %14 = tpu.matmul %9, %4, %cst_18 {dimension_numbers = #tpu.dot_dimension_numbers<[1], [0], [0], [1], [0, 0, 1, 1], [], []>} : vector<8x32xf32>, vector<32x128xf32>, vector<8x128xf32> -> vector<8x128xf32>
    %15 = arith.addf %13, %14 : vector<8x128xf32>
    %c0_19 = arith.constant 0 : index
    %c0_20 = arith.constant 0 : index
    %16 = vector.load %arg8[%c0_19, %c0_20] : memref<1x128xf32, #tpu.memory_space<vmem>>, vector<1x128xf32>
    %17 = vector.broadcast %16 : vector<1x128xf32> to vector<8x128xf32>
    %18 = arith.addf %15, %17 : vector<8x128xf32>
    %cst_21 = arith.constant dense<0.000000e+00> : vector<8x128xf32>
    %19 = tpu.matmul %8, %3, %cst_21 {dimension_numbers = #tpu.dot_dimension_numbers<[1], [0], [0], [1], [0, 0, 1, 1], [], []>} : vector<8x8xf32>, vector<8x128xf32>, vector<8x128xf32> -> vector<8x128xf32>
    %cst_22 = arith.constant dense<0.000000e+00> : vector<8x128xf32>
    %20 = tpu.matmul %10, %4, %cst_22 {dimension_numbers = #tpu.dot_dimension_numbers<[1], [0], [0], [1], [0, 0, 1, 1], [], []>} : vector<8x32xf32>, vector<32x128xf32>, vector<8x128xf32> -> vector<8x128xf32>
    %21 = arith.addf %19, %20 : vector<8x128xf32>
    %22 = vector.extract_strided_slice %18 {offsets = [0, 0], sizes = [8, 96], strides = [1, 1]} : vector<8x128xf32> to vector<8x96xf32>
    %23 = arith.negf %22 : vector<8x96xf32>
    %24 = math.exp %23 : vector<8x96xf32>
    %cst_23 = arith.constant 1.000000e+00 : f32
    %25 = vector.broadcast %cst_23 : f32 to vector<8x96xf32>
    %26 = arith.addf %25, %24 : vector<8x96xf32>
    %27 = arith.divf %25, %26 : vector<8x96xf32>
    %28 = vector.extract_strided_slice %18 {offsets = [0, 96], sizes = [8, 32], strides = [1, 1]} : vector<8x128xf32> to vector<8x32xf32>
    %29 = math.tanh %28 : vector<8x32xf32>
    %cst_24 = arith.constant 1.000000e+00 : f32
    %30 = vector.broadcast %cst_24 : f32 to vector<8x96xf32>
    %31 = arith.subf %30, %27 : vector<8x96xf32>
    %32 = arith.mulf %27, %31 : vector<8x96xf32>
    %33 = vector.extract_strided_slice %21 {offsets = [0, 0], sizes = [8, 96], strides = [1, 1]} : vector<8x128xf32> to vector<8x96xf32>
    %34 = arith.mulf %32, %33 : vector<8x96xf32>
    %35 = arith.mulf %29, %29 : vector<8x32xf32>
    %cst_25 = arith.constant 1.000000e+00 : f32
    %36 = vector.broadcast %cst_25 : f32 to vector<8x32xf32>
    %37 = arith.subf %36, %35 : vector<8x32xf32>
    %38 = vector.extract_strided_slice %21 {offsets = [0, 96], sizes = [8, 32], strides = [1, 1]} : vector<8x128xf32> to vector<8x32xf32>
    %39 = arith.mulf %37, %38 : vector<8x32xf32>
    %40 = vector.extract_strided_slice %27 {offsets = [0, 0], sizes = [8, 32], strides = [1, 1]} : vector<8x96xf32> to vector<8x32xf32>
    %41 = vector.extract_strided_slice %27 {offsets = [0, 32], sizes = [8, 32], strides = [1, 1]} : vector<8x96xf32> to vector<8x32xf32>
    %42 = vector.extract_strided_slice %27 {offsets = [0, 64], sizes = [8, 32], strides = [1, 1]} : vector<8x96xf32> to vector<8x32xf32>
    %43 = vector.extract_strided_slice %34 {offsets = [0, 0], sizes = [8, 32], strides = [1, 1]} : vector<8x96xf32> to vector<8x32xf32>
    %44 = vector.extract_strided_slice %34 {offsets = [0, 32], sizes = [8, 32], strides = [1, 1]} : vector<8x96xf32> to vector<8x32xf32>
    %45 = vector.extract_strided_slice %34 {offsets = [0, 64], sizes = [8, 32], strides = [1, 1]} : vector<8x96xf32> to vector<8x32xf32>
    %46 = arith.mulf %41, %11 : vector<8x32xf32>
    %47 = arith.mulf %40, %29 : vector<8x32xf32>
    %48 = arith.addf %46, %47 : vector<8x32xf32>
    %49 = math.tanh %48 : vector<8x32xf32>
    %50 = arith.mulf %42, %49 : vector<8x32xf32>
    %51 = arith.mulf %44, %11 : vector<8x32xf32>
    %52 = arith.mulf %41, %12 : vector<8x32xf32>
    %53 = arith.addf %51, %52 : vector<8x32xf32>
    %54 = arith.mulf %43, %29 : vector<8x32xf32>
    %55 = arith.addf %53, %54 : vector<8x32xf32>
    %56 = arith.mulf %40, %39 : vector<8x32xf32>
    %57 = arith.addf %55, %56 : vector<8x32xf32>
    %58 = arith.mulf %45, %49 : vector<8x32xf32>
    %59 = arith.mulf %49, %49 : vector<8x32xf32>
    %cst_26 = arith.constant 1.000000e+00 : f32
    %60 = vector.broadcast %cst_26 : f32 to vector<8x32xf32>
    %61 = arith.subf %60, %59 : vector<8x32xf32>
    %62 = arith.mulf %42, %61 : vector<8x32xf32>
    %63 = arith.mulf %62, %57 : vector<8x32xf32>
    %64 = arith.addf %58, %63 : vector<8x32xf32>
    %c0_27 = arith.constant 0 : index
    %c0_28 = arith.constant 0 : index
    %65 = vector.load %arg10[%c0_27, %c0_28] : memref<8x32xf32, #tpu.memory_space<vmem>>, vector<8x32xf32>
    tpu.vector_store %arg10[%c0_27, %c0_28], %50 {strides = array<i32>} : memref<8x32xf32, #tpu.memory_space<vmem>>, vector<8x32xf32>,
    %c0_29 = arith.constant 0 : index
    %c0_30 = arith.constant 0 : index
    %66 = vector.load %arg11[%c0_29, %c0_30] : memref<8x32xf32, #tpu.memory_space<vmem>>, vector<8x32xf32>
    tpu.vector_store %arg11[%c0_29, %c0_30], %64 {strides = array<i32>} : memref<8x32xf32, #tpu.memory_space<vmem>>, vector<8x32xf32>,
    %c0_31 = arith.constant 0 : index
    %c0_32 = arith.constant 0 : index
    %67 = vector.load %arg12[%c0_31, %c0_32] : memref<8x32xf32, #tpu.memory_space<vmem>>, vector<8x32xf32>
    tpu.vector_store %arg12[%c0_31, %c0_32], %48 {strides = array<i32>} : memref<8x32xf32, #tpu.memory_space<vmem>>, vector<8x32xf32>,
    %c0_33 = arith.constant 0 : index
    %c0_34 = arith.constant 0 : index
    %68 = vector.load %arg13[%c0_33, %c0_34] : memref<8x32xf32, #tpu.memory_space<vmem>>, vector<8x32xf32>
    tpu.vector_store %arg13[%c0_33, %c0_34], %57 {strides = array<i32>} : memref<8x32xf32, #tpu.memory_space<vmem>>, vector<8x32xf32>,
    %69 = tpu.concatenate %64, %50, %48, %57 in 1 : vector<8x32xf32>, vector<8x32xf32>, vector<8x32xf32>, vector<8x32xf32> -> vector<8x128xf32>
    %c0_35 = arith.constant 0 : index
    %c0_36 = arith.constant 0 : index
    %c0_37 = arith.constant 0 : index
    %70 = vector.load %arg9[%c0_35, %c0_36, %c0_37] : memref<1x8x128xf32, #tpu.memory_space<vmem>>, vector<1x8x128xf32>
    %71 = vector.shape_cast %70 : vector<1x8x128xf32> to vector<8x128xf32>
    %72 = vector.shape_cast %69 : vector<8x128xf32> to vector<1x8x128xf32>
    tpu.vector_store %arg9[%c0_35, %c0_36, %c0_37], %72 {strides = array<i32>} : memref<1x8x128xf32, #tpu.memory_space<vmem>>, vector<1x8x128xf32>,
    return
  }
  func.func @transform_0(%arg0: i32, %arg1: i32) -> (i32, i32, i32) {
    %c0_i32 = arith.constant 0 : i32
    %c0_i32_0 = arith.constant 0 : i32
    return %arg1, %arg0, %c0_i32 : i32, i32, i32
  }
  func.func @transform_1(%arg0: i32, %arg1: i32) -> (i32, i32, i32) {
    %c0_i32 = arith.constant 0 : i32
    %c0_i32_0 = arith.constant 0 : i32
    return %arg1, %arg0, %c0_i32 : i32, i32, i32
  }
  func.func @transform_2(%arg0: i32, %arg1: i32) -> (i32, i32) {
    %c0_i32 = arith.constant 0 : i32
    %c0_i32_0 = arith.constant 0 : i32
    return %arg0, %c0_i32 : i32, i32
  }
  func.func @transform_3(%arg0: i32, %arg1: i32) -> (i32, i32) {
    %c0_i32 = arith.constant 0 : i32
    %c0_i32_0 = arith.constant 0 : i32
    return %arg0, %c0_i32 : i32, i32
  }
  func.func @transform_4(%arg0: i32, %arg1: i32) -> (i32, i32) {
    %c0_i32 = arith.constant 0 : i32
    %c0_i32_0 = arith.constant 0 : i32
    %c0_i32_1 = arith.constant 0 : i32
    return %c0_i32, %c0_i32_0 : i32, i32
  }
  func.func @transform_5(%arg0: i32, %arg1: i32) -> (i32, i32) {
    %c0_i32 = arith.constant 0 : i32
    %c0_i32_0 = arith.constant 0 : i32
    %c0_i32_1 = arith.constant 0 : i32
    return %c0_i32, %c0_i32_0 : i32, i32
  }
  func.func @transform_6(%arg0: i32, %arg1: i32) -> (i32, i32) {
    %c0_i32 = arith.constant 0 : i32
    %c0_i32_0 = arith.constant 0 : i32
    %c0_i32_1 = arith.constant 0 : i32
    return %c0_i32, %c0_i32_0 : i32, i32
  }
  func.func @transform_7(%arg0: i32, %arg1: i32) -> (i32, i32, i32) {
    %c0_i32 = arith.constant 0 : i32
    %c0_i32_0 = arith.constant 0 : i32
    return %arg1, %arg0, %c0_i32 : i32, i32, i32
  }
}

</mosaic_0001>

<llo_original>
// kernel: cont_lstm_delay_scan.1
$region0: #{cont_lstm_delay_scan.1}
  #allocation0 [shape = 'u32[]', space=smem, size = 0x4, offset = 0x4, fixed_abs, tag = 'smem constant byte address 0x4 - core index']
  #allocation1 [shape = 'u32[144,128]{1,0:T(1,128)}', space=vmem, size = 0x12000, scoped, tag = 'internal scratch']
  #allocation2 [shape = 'f32[8,32]{1,0:T(8,128)}', space=vmem, size = 0x1000, scoped, tag = 'scratch operand']
  #allocation3 [shape = 'f32[8,32]{1,0:T(8,128)}', space=vmem, size = 0x1000, scoped, tag = 'scratch operand']
  #allocation4 [shape = 'f32[8,32]{1,0:T(8,128)}', space=vmem, size = 0x1000, scoped, tag = 'scratch operand']
  #allocation5 [shape = 'f32[8,32]{1,0:T(8,128)}', space=vmem, size = 0x1000, scoped, tag = 'scratch operand']
  %s0 = inlined_call_operand.vmem [shape: f32[16,8,8], index: 0, kind: input, shape index: {}]
  %s1 = inlined_call_operand.vmem [shape: f32[16,8,8], index: 1, kind: input, shape index: {}]
  %s2 = inlined_call_operand.vmem [shape: f32[8,32], index: 2, kind: input, shape index: {}]
  %s3 = inlined_call_operand.vmem [shape: f32[8,32], index: 3, kind: input, shape index: {}]
  %s4 = inlined_call_operand.vmem [shape: f32[8,128], index: 4, kind: input, shape index: {}]
  %s5 = inlined_call_operand.vmem [shape: f32[32,128], index: 5, kind: input, shape index: {}]
  %s6 = inlined_call_operand.vmem [shape: f32[1,128], index: 6, kind: input, shape index: {}]
  %s7 = inlined_call_operand.vmem [shape: f32[16,8,128], index: 7, kind: output, shape index: {}]
  %s8 = sld [smem:[#allocation0]]
  $region65: #{cont_lstm_delay_scan.1} parent=0
    _
  %s10 = ssub.s32 1, %s8
  %s11 = scalar_select 0, %s10, %s8
  loop: start=0, step=1, limit=18
  $region2: #{cont_lstm_delay_scan.1} parent=0 // loop_pre_header
    _
  $region3: #{cont_lstm_delay_scan.1} parent=0 // loop_header
    %s13 = sphi 0, %s17
    %p14 = scmp.ge.s32.totalorder %s13, 18
    %s20 = sphi 0, %s32
    %s21 = sphi 0, %s28
    %s22 = sphi 0, %s20
    %s23 = sphi 0, %s21
    %s24 = sphi 0, %s22
    %s25 = sphi 0, %s23
    %s37 = sphi 0, %s39
    %s40 = sphi 0, %s37
    %s41 = sphi 0, %s40
    %s57 = sphi 0, %s41
    %s65 = sphi 0, %s67
    %s68 = sphi 0, %s65
    %s69 = sphi 0, %s68
    %s85 = sphi 0, %s69
    %s91 = sphi 0, %s93
    %s94 = sphi 0, %s91
    %s95 = sphi 0, %s94
    %s111 = sphi 0, %s95
    %s117 = sphi 0, %s119
    %s120 = sphi 0, %s117
    %s121 = sphi 0, %s120
    %s137 = sphi 0, %s121
    %s141 = sphi 0, %s141
    %s143 = sphi 0, %s141
    %s144 = sphi 0, %s143
    %s158 = sphi 0, %s144
    %s162 = sphi 0, %s162
    %s164 = sphi 0, %s162
    %s165 = sphi 0, %s164
    %s179 = sphi 0, %s165
    %s183 = sphi 0, %s183
    %s185 = sphi 0, %s183
    %s186 = sphi 0, %s185
    %s200 = sphi 0, %s186
    %s208 = sphi 0, %s210
    %s211 = sphi 0, %s208
    %s212 = sphi 0, %s211
    %s228 = sphi 0, %s212
  $region4: #{cont_lstm_delay_scan.1} parent=0 // loop_header_branch
    %16 = sbr.rel (%p14) target = $region8
  $region5: #{cont_lstm_delay_scan.1} parent=0 // loop_body
    %s18 = ssub.s32 %s13, 1
    %s19 = ssub.s32 %s13, 2
    %s26 = sadd.s32 1, %s21
    %p27 = scmp.ge.s32.totalorder %s26, 16
    %s28 = scalar_select %p27, 0, %s26
    %s29 = sadd.s32 1, %s20
    %s30 = scalar_select %p27, %s29, %s20
    %p31 = scmp.ge.s32.totalorder %s30, 1
    %s32 = scalar_select %p31, 0, %s30
    %s33 = ssub.s32 %s21, %s28
    %s34 = ssub.s32 %s20, %s32
    %s35 = sor.u32 %s33, %s34
    %p36 = scmp.eq.s32.totalorder %s35, 0
    %s38 = sadd.s32 %s37, 1
    %s39 = scalar_select %p36, %s37, %s38
    %p42 = pneg %p36
    %p43 = scmp.eq.s32.totalorder %s13, 15
    %p44 = por %p42, %p43
    %p45 = scmp.ne.s32.totalorder %s37, %s40
    %p46 = scmp.eq.s32.totalorder %s13, 0
    %p47 = por %p45, %p46
    %p48 = scmp.ne.s32.totalorder %s37, %s40
    %p49 = scmp.eq.s32.totalorder %s18, 15
    %p50 = por %p48, %p49
    %p51 = scmp.ne.s32.totalorder %s40, %s41
    %p52 = scmp.eq.s32.totalorder %s18, 0
    %p53 = por %p51, %p52
    %p54 = scmp.ne.s32.totalorder %s40, %s41
    %p55 = scmp.eq.s32.totalorder %s19, 15
    %p56 = por %p54, %p55
    %p58 = scmp.ne.s32.totalorder %s41, %s57
    %p59 = scmp.eq.s32.totalorder %s19, 0
    %p60 = por %p58, %p59
    %s61 = ssub.s32 %s21, %s28
    %s62 = ssub.s32 %s20, %s32
    %s63 = sor.u32 %s61, %s62
    %p64 = scmp.eq.s32.totalorder %s63, 0
    %s66 = sadd.s32 %s65, 1
    %s67 = scalar_select %p64, %s65, %s66
    %p70 = pneg %p64
    %p71 = scmp.eq.s32.totalorder %s13, 15
    %p72 = por %p70, %p71
    %p73 = scmp.ne.s32.totalorder %s65, %s68
    %p74 = scmp.eq.s32.totalorder %s13, 0
    %p75 = por %p73, %p74
    %p76 = scmp.ne.s32.totalorder %s65, %s68
    %p77 = scmp.eq.s32.totalorder %s18, 15
    %p78 = por %p76, %p77
    %p79 = scmp.ne.s32.totalorder %s68, %s69
    %p80 = scmp.eq.s32.totalorder %s18, 0
    %p81 = por %p79, %p80
    %p82 = scmp.ne.s32.totalorder %s68, %s69
    %p83 = scmp.eq.s32.totalorder %s19, 15
    %p84 = por %p82, %p83
    %p86 = scmp.ne.s32.totalorder %s69, %s85
    %p87 = scmp.eq.s32.totalorder %s19, 0
    %p88 = por %p86, %p87
    %s89 = ssub.s32 %s20, %s32
    %p90 = scmp.eq.s32.totalorder %s89, 0
    %s92 = sadd.s32 %s91, 1
    %s93 = scalar_select %p90, %s91, %s92
    %p96 = pneg %p90
    %p97 = scmp.eq.s32.totalorder %s13, 15
    %p98 = por %p96, %p97
    %p99 = scmp.ne.s32.totalorder %s91, %s94
    %p100 = scmp.eq.s32.totalorder %s13, 0
    %p101 = por %p99, %p100
    %p102 = scmp.ne.s32.totalorder %s91, %s94
    %p103 = scmp.eq.s32.totalorder %s18, 15
    %p104 = por %p102, %p103
    %p105 = scmp.ne.s32.totalorder %s94, %s95
    %p106 = scmp.eq.s32.totalorder %s18, 0
    %p107 = por %p105, %p106
    %p108 = scmp.ne.s32.totalorder %s94, %s95
    %p109 = scmp.eq.s32.totalorder %s19, 15
    %p110 = por %p108, %p109
    %p112 = scmp.ne.s32.totalorder %s95, %s111
    %p113 = scmp.eq.s32.totalorder %s19, 0
    %p114 = por %p112, %p113
    %s115 = ssub.s32 %s20, %s32
    %p116 = scmp.eq.s32.totalorder %s115, 0
    %s118 = sadd.s32 %s117, 1
    %s119 = scalar_select %p116, %s117, %s118
    %p122 = pneg %p116
    %p123 = scmp.eq.s32.totalorder %s13, 15
    %p124 = por %p122, %p123
    %p125 = scmp.ne.s32.totalorder %s117, %s120
    %p126 = scmp.eq.s32.totalorder %s13, 0
    %p127 = por %p125, %p126
    %p128 = scmp.ne.s32.totalorder %s117, %s120
    %p129 = scmp.eq.s32.totalorder %s18, 15
    %p130 = por %p128, %p129
    %p131 = scmp.ne.s32.totalorder %s120, %s121
    %p132 = scmp.eq.s32.totalorder %s18, 0
    %p133 = por %p131, %p132
    %p134 = scmp.ne.s32.totalorder %s120, %s121
    %p135 = scmp.eq.s32.totalorder %s19, 15
    %p136 = por %p134, %p135
    %p138 = scmp.ne.s32.totalorder %s121, %s137
    %p139 = scmp.eq.s32.totalorder %s19, 0
    %p140 = por %p138, %p139
    %s142 = sadd.s32 %s141, 1
    %p145 = scmp.eq.s32.totalorder %s13, 15
    %p146 = scmp.ne.s32.totalorder %s141, %s143
    %p147 = scmp.eq.s32.totalorder %s13, 0
    %p148 = por %p146, %p147
    %p149 = scmp.ne.s32.totalorder %s141, %s143
    %p150 = scmp.eq.s32.totalorder %s18, 15
    %p151 = por %p149, %p150
    %p152 = scmp.ne.s32.totalorder %s143, %s144
    %p153 = scmp.eq.s32.totalorder %s18, 0
    %p154 = por %p152, %p153
    %p155 = scmp.ne.s32.totalorder %s143, %s144
    %p156 = scmp.eq.s32.totalorder %s19, 15
    %p157 = por %p155, %p156
    %p159 = scmp.ne.s32.totalorder %s144, %s158
    %p160 = scmp.eq.s32.totalorder %s19, 0
    %p161 = por %p159, %p160
    %s163 = sadd.s32 %s162, 1
    %p166 = scmp.eq.s32.totalorder %s13, 15
    %p167 = scmp.ne.s32.totalorder %s162, %s164
    %p168 = scmp.eq.s32.totalorder %s13, 0
    %p169 = por %p167, %p168
    %p170 = scmp.ne.s32.totalorder %s162, %s164
    %p171 = scmp.eq.s32.totalorder %s18, 15
    %p172 = por %p170, %p171
    %p173 = scmp.ne.s32.totalorder %s164, %s165
    %p174 = scmp.eq.s32.totalorder %s18, 0
    %p175 = por %p173, %p174
    %p176 = scmp.ne.s32.totalorder %s164, %s165
    %p177 = scmp.eq.s32.totalorder %s19, 15
    %p178 = por %p176, %p177
    %p180 = scmp.ne.s32.totalorder %s165, %s179
    %p181 = scmp.eq.s32.totalorder %s19, 0
    %p182 = por %p180, %p181
    %s184 = sadd.s32 %s183, 1
    %p187 = scmp.eq.s32.totalorder %s13, 15
    %p188 = scmp.ne.s32.totalorder %s183, %s185
    %p189 = scmp.eq.s32.totalorder %s13, 0
    %p190 = por %p188, %p189
    %p191 = scmp.ne.s32.totalorder %s183, %s185
    %p192 = scmp.eq.s32.totalorder %s18, 15
    %p193 = por %p191, %p192
    %p194 = scmp.ne.s32.totalorder %s185, %s186
    %p195 = scmp.eq.s32.totalorder %s18, 0
    %p196 = por %p194, %p195
    %p197 = scmp.ne.s32.totalorder %s185, %s186
    %p198 = scmp.eq.s32.totalorder %s19, 15
    %p199 = por %p197, %p198
    %p201 = scmp.ne.s32.totalorder %s186, %s200
    %p202 = scmp.eq.s32.totalorder %s19, 0
    %p203 = por %p201, %p202
    %s204 = ssub.s32 %s21, %s28
    %s205 = ssub.s32 %s20, %s32
    %s206 = sor.u32 %s204, %s205
    %p207 = scmp.eq.s32.totalorder %s206, 0
    %s209 = sadd.s32 %s208, 1
    %s210 = scalar_select %p207, %s208, %s209
    %p213 = pneg %p207
    %p214 = scmp.eq.s32.totalorder %s13, 15
    %p215 = por %p213, %p214
    %p216 = scmp.ne.s32.totalorder %s208, %s211
    %p217 = scmp.eq.s32.totalorder %s13, 0
    %p218 = por %p216, %p217
    %p219 = scmp.ne.s32.totalorder %s208, %s211
    %p220 = scmp.eq.s32.totalorder %s18, 15
    %p221 = por %p219, %p220
    %p222 = scmp.ne.s32.totalorder %s211, %s212
    %p223 = scmp.eq.s32.totalorder %s18, 0
    %p224 = por %p222, %p223
    %p225 = scmp.ne.s32.totalorder %s211, %s212
    %p226 = scmp.eq.s32.totalorder %s19, 15
    %p227 = por %p225, %p226
    %p229 = scmp.ne.s32.totalorder %s212, %s228
    %p230 = scmp.eq.s32.totalorder %s19, 0
    %p231 = por %p229, %p230
    %p232 = scmp.le.s32.totalorder 1, %s13
    %p233 = scmp.lt.s32.totalorder %s13, 17
    %p234 = pnand %p232, %p233
    %p235 = pneg %p234
    // Predicated region
    $region9: #{cont_lstm_delay_scan.1} parent=5 // pred_check
      _
    $region10: #{cont_lstm_delay_scan.1} parent=5 // pred_check_branch
      %237 = sbr.rel (%p234) target = $region12
    $region11: #{cont_lstm_delay_scan.1} parent=5 // pred_region
      %s238 = ssub.s32 %s13, 1
      // Predicated region
      $region13: #{cont_lstm_delay_scan.1} parent=11 // pred_check
        %p239 = pneg %p107
      $region14: #{cont_lstm_delay_scan.1} parent=11 // pred_check_branch
        %241 = sbr.rel (%p239) target = $region16
      $region15: #{cont_lstm_delay_scan.1} parent=11 // pred_region
        %p242 = scmp.lt.s32.totalorder %s22, 0
        %s243 = scalar_select %p242, %s22, 0
        %s244 = smul.addr %s243, 8
        %s245 = scalar_lea.vmem %s2, %s244
      $region16: #{cont_lstm_delay_scan.1} parent=11 // pred_fallthru
        _
      // Predicated region
      $region17: #{cont_lstm_delay_scan.1} parent=11 // pred_check
        %p246 = pneg %p133
      $region18: #{cont_lstm_delay_scan.1} parent=11 // pred_check_branch
        %248 = sbr.rel (%p246) target = $region20
      $region19: #{cont_lstm_delay_scan.1} parent=11 // pred_region
        %p249 = scmp.lt.s32.totalorder %s22, 0
        %s250 = scalar_select %p249, %s22, 0
        %s251 = smul.addr %s250, 8
        %s252 = scalar_lea.vmem %s3, %s251
      $region20: #{cont_lstm_delay_scan.1} parent=11 // pred_fallthru
        _
      // Predicated region
      $region21: #{cont_lstm_delay_scan.1} parent=11 // pred_check
        %p253 = pneg %p154
      $region22: #{cont_lstm_delay_scan.1} parent=11 // pred_check_branch
        %255 = sbr.rel (%p253) target = $region24
      $region23: #{cont_lstm_delay_scan.1} parent=11 // pred_region
        _
      $region24: #{cont_lstm_delay_scan.1} parent=11 // pred_fallthru
        _
      // Predicated region
      $region25: #{cont_lstm_delay_scan.1} parent=11 // pred_check
        %p256 = pneg %p175
      $region26: #{cont_lstm_delay_scan.1} parent=11 // pred_check_branch
        %258 = sbr.rel (%p256) target = $region28
      $region27: #{cont_lstm_delay_scan.1} parent=11 // pred_region
        _
      $region28: #{cont_lstm_delay_scan.1} parent=11 // pred_fallthru
        _
      // Predicated region
      $region29: #{cont_lstm_delay_scan.1} parent=11 // pred_check
        %p259 = pneg %p196
      $region30: #{cont_lstm_delay_scan.1} parent=11 // pred_check_branch
        %261 = sbr.rel (%p259) target = $region32
      $region31: #{cont_lstm_delay_scan.1} parent=11 // pred_region
        _
      $region32: #{cont_lstm_delay_scan.1} parent=11 // pred_fallthru
        _
    $region12: #{cont_lstm_delay_scan.1} parent=5 // pred_fallthru
      _
    %p262 = scmp.lt.s32.totalorder %s13, 16
    // Predicated region
    $region33: #{cont_lstm_delay_scan.1} parent=5 // pred_check
      %p263 = pneg %p262
    $region34: #{cont_lstm_delay_scan.1} parent=5 // pred_check_branch
      %265 = sbr.rel (%p263) target = $region36
    $region35: #{cont_lstm_delay_scan.1} parent=5 // pred_region
      // Predicated region
      $region37: #{cont_lstm_delay_scan.1} parent=35 // pred_check
        %p266 = pneg %p47
      $region38: #{cont_lstm_delay_scan.1} parent=35 // pred_check_branch
        %268 = sbr.rel (%p266) target = $region40
      $region39: #{cont_lstm_delay_scan.1} parent=35 // pred_region
        %p269 = scmp.lt.s32.totalorder %s21, 15
        %s270 = scalar_select %p269, %s21, 15
        %p271 = scmp.lt.s32.totalorder %s20, 0
        %s272 = scalar_select %p271, %s20, 0
        %s273 = sadd.s32 %s272, %s270
        %s274 = smul.addr %s273, 8
        %s275 = scalar_lea.vmem %s0, %s274
      $region40: #{cont_lstm_delay_scan.1} parent=35 // pred_fallthru
        _
      // Predicated region
      $region41: #{cont_lstm_delay_scan.1} parent=35 // pred_check
        %p276 = pneg %p75
      $region42: #{cont_lstm_delay_scan.1} parent=35 // pred_check_branch
        %278 = sbr.rel (%p276) target = $region44
      $region43: #{cont_lstm_delay_scan.1} parent=35 // pred_region
        %p279 = scmp.lt.s32.totalorder %s21, 15
        %s280 = scalar_select %p279, %s21, 15
        %p281 = scmp.lt.s32.totalorder %s20, 0
        %s282 = scalar_select %p281, %s20, 0
        %s283 = sadd.s32 %s282, %s280
        %s284 = smul.addr %s283, 8
        %s285 = scalar_lea.vmem %s1, %s284
      $region44: #{cont_lstm_delay_scan.1} parent=35 // pred_fallthru
        _
    $region36: #{cont_lstm_delay_scan.1} parent=5 // pred_fallthru
      _
    %p286 = scmp.le.s32.totalorder 1, %s13
    %p287 = scmp.lt.s32.totalorder %s13, 17
    %p288 = pnand %p286, %p287
    %p289 = pneg %p288
    // Predicated region
    $region45: #{cont_lstm_delay_scan.1} parent=5 // pred_check
      _
    $region46: #{cont_lstm_delay_scan.1} parent=5 // pred_check_branch
      %291 = sbr.rel (%p288) target = $region48
    $region47: #{cont_lstm_delay_scan.1} parent=5 // pred_region
      %s292 = ssub.s32 %s13, 1
      %p293 = scmp.lt.s32.totalorder %s23, 15
      %s294 = scalar_select %p293, %s23, 15
      %p295 = scmp.lt.s32.totalorder %s22, 0
      %s296 = scalar_select %p295, %s22, 0
      %s297 = sadd.s32 %s296, %s294
      %s298 = smul.addr %s297, 8
      %s299 = scalar_lea.vmem %s0, %s298
      %p300 = pneg %p53
      %p301 = pneg %p50
      %p302 = scmp.lt.s32.totalorder %s23, 15
      %s303 = scalar_select %p302, %s23, 15
      %p304 = scmp.lt.s32.totalorder %s22, 0
      %s305 = scalar_select %p304, %s22, 0
      %s306 = sadd.s32 %s305, %s303
      %s307 = smul.addr %s306, 8
      %s308 = scalar_lea.vmem %s1, %s307
      %p309 = pneg %p81
      %p310 = pneg %p78
      %p311 = scmp.lt.s32.totalorder %s22, 0
      %s312 = scalar_select %p311, %s22, 0
      %s313 = smul.addr %s312, 8
      %s314 = scalar_lea.vmem %s2, %s313
      %p315 = pneg %p107
      %p316 = pneg %p104
      %p317 = scmp.lt.s32.totalorder %s22, 0
      %s318 = scalar_select %p317, %s22, 0
      %s319 = smul.addr %s318, 8
      %s320 = scalar_lea.vmem %s3, %s319
      %p321 = pneg %p133
      %p322 = pneg %p130
      %p323 = pneg %p154
      %p324 = pneg %p151
      %p325 = pneg %p175
      %p326 = pneg %p172
      %p327 = pneg %p196
      %p328 = pneg %p193
      %p329 = pneg %p224
      %p330 = pneg %p221
      %p331 = scmp.lt.s32.totalorder %s23, 15
      %s332 = scalar_select %p331, %s23, 15
      %p333 = scmp.lt.s32.totalorder %s22, 0
      %s334 = scalar_select %p333, %s22, 0
      %s335 = sadd.s32 %s334, %s332
      %s336 = smul.addr %s335, 8
      %s337 = scalar_lea.vmem %s7, %s336
      %p338 = scmp.lt.s32.totalorder %s23, 15
      %s339 = scalar_select %p338, %s23, 15
      %p340 = scmp.lt.s32.totalorder %s22, 0
      %s341 = scalar_select %p340, %s22, 0
      %s342 = sadd.s32 %s341, %s339
      %s343 = smul.addr %s342, 8
      %s344 = scalar_lea.vmem %s0, %s343
      %p345 = scmp.lt.s32.totalorder %s23, 15
      %s346 = scalar_select %p345, %s23, 15
      %p347 = scmp.lt.s32.totalorder %s22, 0
      %s348 = scalar_select %p347, %s22, 0
      %s349 = sadd.s32 %s348, %s346
      %s350 = smul.addr %s349, 8
      %s351 = scalar_lea.vmem %s1, %s350
      %p352 = scmp.lt.s32.totalorder %s22, 0
      %s353 = scalar_select %p352, %s22, 0
      %s354 = smul.addr %s353, 8
      %s355 = scalar_lea.vmem %s2, %s354
      %p356 = scmp.lt.s32.totalorder %s22, 0
      %s357 = scalar_select %p356, %s22, 0
      %s358 = smul.addr %s357, 8
      %s359 = scalar_lea.vmem %s3, %s358
      %p360 = scmp.lt.s32.totalorder %s23, 15
      %s361 = scalar_select %p360, %s23, 15
      %p362 = scmp.lt.s32.totalorder %s22, 0
      %s363 = scalar_select %p362, %s22, 0
      %s364 = sadd.s32 %s363, %s361
      %s365 = smul.addr %s364, 8
      %s366 = scalar_lea.vmem %s7, %s365
      %p367 = scmp.eq.s32.totalorder %s23, 0
      // Predicated region
      $region49: #{cont_lstm_delay_scan.1} parent=47 // pred_check
        %p368 = pneg %p367
      $region50: #{cont_lstm_delay_scan.1} parent=47 // pred_check_branch
        %370 = sbr.rel (%p368) target = $region52
      $region51: #{cont_lstm_delay_scan.1} parent=47 // pred_region
        %v371 = vld [vmem:[%s355] sm:$0xff]
        %vm372 = vcmask 261120
        %373 = vst.msk [vmem:[#allocation2] sm:$0xff] %vm372, %v371
        %v374 = vld [vmem:[%s359] sm:$0xff]
        %375 = vst.msk [vmem:[#allocation4] sm:$0xff] %vm372, %v374
        %376 = vst.msk [vmem:[#allocation3] sm:$0xff] %vm372, 0.0
        %377 = vst.msk [vmem:[#allocation5] sm:$0xff] %vm372, 0.0
      $region52: #{cont_lstm_delay_scan.1} parent=47 // pred_fallthru
        _
      %v378 = vld [vmem:[%s4] sm:$0xff]
      %v379 = vld [vmem:[%s5] sm:$0xff]
      %v380 = vld [vmem:[%s5 + $0x8] sm:$0xff]
      %v381 = vld [vmem:[%s5 + $0x10] sm:$0xff]
      %v382 = vld [vmem:[%s5 + $0x18] sm:$0xff]
      %v383 = vld [vmem:[%s344] sm:$0xff]
      %v384 = vld [vmem:[%s351] sm:$0xff]
      %v385 = vld [vmem:[#allocation2] sm:$0xff]
      %v386 = vld [vmem:[#allocation3] sm:$0xff]
      %v387 = vld [vmem:[#allocation4] sm:$0xff]
      %v388 = vld [vmem:[#allocation5] sm:$0xff]
      %vm389 = vcmask 261120
      %v391 = vsel %vm389, %v385, 0
      %393 = vmatprep.subr.mxu0 0.0
      %394 = vmatpush1.msra.mxu0 %v379
      %395 = vmatprep.subr.mxu0 0.0
      %396 = vmatpush1.msra.mxu0 %v380
      %397 = vmatprep.subr.mxu0 0.0
      %398 = vmatpush1.msra.mxu0 %v381
      %399 = vmatprep.subr.mxu0 0.0
      %400 = vmatpush1.msra.mxu0 %v382
      %401 = vmatprep.subr.mxu0 0.0
      %402 = vmatpush1.msra.mxu0 0.0
      %403 = vmatprep.subr.mxu0 0.0
      %404 = vmatpush1.msra.mxu0 0.0
      %405 = vmatprep.subr.mxu0 0.0
      %406 = vmatpush1.msra.mxu0 0.0
      %407 = vmatprep.subr.mxu0 0.0
      %408 = vmatpush1.msra.mxu0 0.0
      %409 = vmatprep.subr.mxu0 0.0
      %410 = vmatpush1.msra.mxu0 0.0
      %411 = vmatprep.subr.mxu0 0.0
      %412 = vmatpush1.msra.mxu0 0.0
      %413 = vmatprep.subr.mxu0 0.0
      %414 = vmatpush1.msra.mxu0 0.0
      %415 = vmatprep.subr.mxu0 0.0
      %416 = vmatpush1.msra.mxu0 0.0
      %417 = vmatprep.subr.mxu0 0.0
      %418 = vmatpush1.msra.mxu0 0.0
      %419 = vmatprep.subr.mxu0 0.0
      %420 = vmatpush1.msra.mxu0 0.0
      %421 = vmatprep.subr.mxu0 0.0
      %422 = vmatpush1.msra.mxu0 0.0
      %423 = vmatprep.subr.mxu0 0.0
      %424 = vmatpush1.msra.mxu0 0.0
      %425 = vmatprep.subr.mxu0 0.0
      %426 = vmatpush1.msra.mxu0 0.0
      %427 = vmatprep.subr.mxu0 0.0
      %428 = vmatpush1.msra.mxu0 0.0
      %429 = vmatprep.subr.mxu0 0.0
      %430 = vmatpush1.msra.mxu0 0.0
      %431 = vmatprep.subr.mxu0 0.0
      %432 = vmatpush1.msra.mxu0 0.0
      %433 = vmatprep.subr.mxu0 0.0
      %434 = vmatpush1.msra.mxu0 0.0
      %435 = vmatprep.subr.mxu0 0.0
      %436 = vmatpush1.msra.mxu0 0.0
      %437 = vmatprep.subr.mxu0 0.0
      %438 = vmatpush1.msra.mxu0 0.0
      %439 = vmatprep.subr.mxu0 0.0
      %440 = vmatpush1.msra.mxu0 0.0
      %441 = vmatprep.subr.mxu0 0.0
      %442 = vmatpush1.msra.mxu0 0.0
      %443 = vmatprep.subr.mxu0 0.0
      %444 = vmatpush1.msra.mxu0 0.0
      %445 = vmatprep.subr.mxu0 0.0
      %446 = vmatpush1.msra.mxu0 0.0
      %447 = vmatprep.subr.mxu0 0.0
      %448 = vmatpush1.msra.mxu0 0.0
      %449 = vmatprep.subr.mxu0 0.0
      %450 = vmatpush1.msra.mxu0 0.0
      %451 = vmatprep.subr.mxu0 0.0
      %452 = vmatpush1.msra.mxu0 0.0
      %453 = vmatprep.subr.mxu0 0.0
      %454 = vmatpush1.msra.mxu0 0.0
      %455 = vmatprep.subr.mxu0 0.0
      %456 = vmatpush1.msra.mxu0 0.0
      %457 = vmatprep.mubr.f32.mxu0 0.0
      %458 = vmatmul.mubr.f32.gmra.mrb[0].mxu0 %v391
      %v459 = vpop.f32.mrb[0].mxu0
      %v460 = vadd.f32 0.0, %v459
      %v461 = vpop.f32.mrb[0].mxu0
      %462 = vdwg.mxu0
      %vm463 = vcmask 64512
      %v465 = vsel %vm463, %v383, 0
      %467 = vmatprep.subr.mxu0 0.0
      %468 = vmatpush1.msra.mxu0 %v378
      %469 = vmatprep.subr.mxu0 0.0
      %470 = vmatpush1.msra.mxu0 0.0
      %471 = vmatprep.subr.mxu0 0.0
      %472 = vmatpush1.msra.mxu0 0.0
      %473 = vmatprep.subr.mxu0 0.0
      %474 = vmatpush1.msra.mxu0 0.0
      %475 = vmatprep.subr.mxu0 0.0
      %476 = vmatpush1.msra.mxu0 0.0
      %477 = vmatprep.subr.mxu0 0.0
      %478 = vmatpush1.msra.mxu0 0.0
      %479 = vmatprep.subr.mxu0 0.0
      %480 = vmatpush1.msra.mxu0 0.0
      %481 = vmatprep.subr.mxu0 0.0
      %482 = vmatpush1.msra.mxu0 0.0
      %483 = vmatprep.subr.mxu0 0.0
      %484 = vmatpush1.msra.mxu0 0.0
      %485 = vmatprep.subr.mxu0 0.0
      %486 = vmatpush1.msra.mxu0 0.0
      %487 = vmatprep.subr.mxu0 0.0
      %488 = vmatpush1.msra.mxu0 0.0
      %489 = vmatprep.subr.mxu0 0.0
      %490 = vmatpush1.msra.mxu0 0.0
      %491 = vmatprep.subr.mxu0 0.0
      %492 = vmatpush1.msra.mxu0 0.0
      %493 = vmatprep.subr.mxu0 0.0
      %494 = vmatpush1.msra.mxu0 0.0
      %495 = vmatprep.subr.mxu0 0.0
      %496 = vmatpush1.msra.mxu0 0.0
      %497 = vmatprep.subr.mxu0 0.0
      %498 = vmatpush1.msra.mxu0 0.0
      %499 = vmatprep.subr.mxu0 0.0
      %500 = vmatpush1.msra.mxu0 0.0
      %501 = vmatprep.subr.mxu0 0.0
      %502 = vmatpush1.msra.mxu0 0.0
      %503 = vmatprep.subr.mxu0 0.0
      %504 = vmatpush1.msra.mxu0 0.0
      %505 = vmatprep.subr.mxu0 0.0
      %506 = vmatpush1.msra.mxu0 0.0
      %507 = vmatprep.subr.mxu0 0.0
      %508 = vmatpush1.msra.mxu0 0.0
      %509 = vmatprep.subr.mxu0 0.0
      %510 = vmatpush1.msra.mxu0 0.0
      %511 = vmatprep.subr.mxu0 0.0
      %512 = vmatpush1.msra.mxu0 0.0
      %513 = vmatprep.subr.mxu0 0.0
      %514 = vmatpush1.msra.mxu0 0.0
      %515 = vmatprep.subr.mxu0 0.0
      %516 = vmatpush1.msra.mxu0 0.0
      %517 = vmatprep.subr.mxu0 0.0
      %518 = vmatpush1.msra.mxu0 0.0
      %519 = vmatprep.subr.mxu0 0.0
      %520 = vmatpush1.msra.mxu0 0.0
      %521 = vmatprep.subr.mxu0 0.0
      %522 = vmatpush1.msra.mxu0 0.0
      %523 = vmatprep.subr.mxu0 0.0
      %524 = vmatpush1.msra.mxu0 0.0
      %525 = vmatprep.subr.mxu0 0.0
      %526 = vmatpush1.msra.mxu0 0.0
      %527 = vmatprep.subr.mxu0 0.0
      %528 = vmatpush1.msra.mxu0 0.0
      %529 = vmatprep.subr.mxu0 0.0
      %530 = vmatpush1.msra.mxu0 0.0
      %531 = vmatprep.mubr.f32.mxu0 0.0
      %532 = vmatmul.mubr.f32.gmra.mrb[0].mxu0 %v465
      %v533 = vpop.f32.mrb[0].mxu0
      %v534 = vadd.f32 %v460, %v533
      %v535 = vpop.f32.mrb[0].mxu0
      %536 = vdwg.mxu0
      %v537 = vld [vmem:[%s6] sm:$0x1]
      %v539 = vlaneseq
      %v540 = vshrl.u32 %v539, 7
      %v541 = vsub.s32 0, %v540
      %v542 = vrot.slane %v537, %v541
      %v544 = vadd.f32 %v534, %v542
      %v546 = vsel %vm389, %v386, 0
      %548 = vmatprep.subr.mxu0 0.0
      %549 = vmatpush1.msra.mxu0 %v379
      %550 = vmatprep.subr.mxu0 0.0
      %551 = vmatpush1.msra.mxu0 %v380
      %552 = vmatprep.subr.mxu0 0.0
      %553 = vmatpush1.msra.mxu0 %v381
      %554 = vmatprep.subr.mxu0 0.0
      %555 = vmatpush1.msra.mxu0 %v382
      %556 = vmatprep.subr.mxu0 0.0
      %557 = vmatpush1.msra.mxu0 0.0
      %558 = vmatprep.subr.mxu0 0.0
      %559 = vmatpush1.msra.mxu0 0.0
      %560 = vmatprep.subr.mxu0 0.0
      %561 = vmatpush1.msra.mxu0 0.0
      %562 = vmatprep.subr.mxu0 0.0
      %563 = vmatpush1.msra.mxu0 0.0
      %564 = vmatprep.subr.mxu0 0.0
      %565 = vmatpush1.msra.mxu0 0.0
      %566 = vmatprep.subr.mxu0 0.0
      %567 = vmatpush1.msra.mxu0 0.0
      %568 = vmatprep.subr.mxu0 0.0
      %569 = vmatpush1.msra.mxu0 0.0
      %570 = vmatprep.subr.mxu0 0.0
      %571 = vmatpush1.msra.mxu0 0.0
      %572 = vmatprep.subr.mxu0 0.0
      %573 = vmatpush1.msra.mxu0 0.0
      %574 = vmatprep.subr.mxu0 0.0
      %575 = vmatpush1.msra.mxu0 0.0
      %576 = vmatprep.subr.mxu0 0.0
      %577 = vmatpush1.msra.mxu0 0.0
      %578 = vmatprep.subr.mxu0 0.0
      %579 = vmatpush1.msra.mxu0 0.0
      %580 = vmatprep.subr.mxu0 0.0
      %581 = vmatpush1.msra.mxu0 0.0
      %582 = vmatprep.subr.mxu0 0.0
      %583 = vmatpush1.msra.mxu0 0.0
      %584 = vmatprep.subr.mxu0 0.0
      %585 = vmatpush1.msra.mxu0 0.0
      %586 = vmatprep.subr.mxu0 0.0
      %587 = vmatpush1.msra.mxu0 0.0
      %588 = vmatprep.subr.mxu0 0.0
      %589 = vmatpush1.msra.mxu0 0.0
      %590 = vmatprep.subr.mxu0 0.0
      %591 = vmatpush1.msra.mxu0 0.0
      %592 = vmatprep.subr.mxu0 0.0
      %593 = vmatpush1.msra.mxu0 0.0
      %594 = vmatprep.subr.mxu0 0.0
      %595 = vmatpush1.msra.mxu0 0.0
      %596 = vmatprep.subr.mxu0 0.0
      %597 = vmatpush1.msra.mxu0 0.0
      %598 = vmatprep.subr.mxu0 0.0
      %599 = vmatpush1.msra.mxu0 0.0
      %600 = vmatprep.subr.mxu0 0.0
      %601 = vmatpush1.msra.mxu0 0.0
      %602 = vmatprep.subr.mxu0 0.0
      %603 = vmatpush1.msra.mxu0 0.0
      %604 = vmatprep.subr.mxu0 0.0
      %605 = vmatpush1.msra.mxu0 0.0
      %606 = vmatprep.subr.mxu0 0.0
      %607 = vmatpush1.msra.mxu0 0.0
      %608 = vmatprep.subr.mxu0 0.0
      %609 = vmatpush1.msra.mxu0 0.0
      %610 = vmatprep.subr.mxu0 0.0
      %611 = vmatpush1.msra.mxu0 0.0
      %612 = vmatprep.mubr.f32.mxu0 0.0
      %613 = vmatmul.mubr.f32.gmra.mrb[0].mxu0 %v546
      %v614 = vpop.f32.mrb[0].mxu0
      %v615 = vadd.f32 0.0, %v614
      %v616 = vpop.f32.mrb[0].mxu0
      %617 = vdwg.mxu0
      %v619 = vsel %vm463, %v384, 0
      %621 = vmatprep.subr.mxu0 0.0
      %622 = vmatpush1.msra.mxu0 %v378
      %623 = vmatprep.subr.mxu0 0.0
      %624 = vmatpush1.msra.mxu0 0.0
      %625 = vmatprep.subr.mxu0 0.0
      %626 = vmatpush1.msra.mxu0 0.0
      %627 = vmatprep.subr.mxu0 0.0
      %628 = vmatpush1.msra.mxu0 0.0
      %629 = vmatprep.subr.mxu0 0.0
      %630 = vmatpush1.msra.mxu0 0.0
      %631 = vmatprep.subr.mxu0 0.0
      %632 = vmatpush1.msra.mxu0 0.0
      %633 = vmatprep.subr.mxu0 0.0
      %634 = vmatpush1.msra.mxu0 0.0
      %635 = vmatprep.subr.mxu0 0.0
      %636 = vmatpush1.msra.mxu0 0.0
      %637 = vmatprep.subr.mxu0 0.0
      %638 = vmatpush1.msra.mxu0 0.0
      %639 = vmatprep.subr.mxu0 0.0
      %640 = vmatpush1.msra.mxu0 0.0
      %641 = vmatprep.subr.mxu0 0.0
      %642 = vmatpush1.msra.mxu0 0.0
      %643 = vmatprep.subr.mxu0 0.0
      %644 = vmatpush1.msra.mxu0 0.0
      %645 = vmatprep.subr.mxu0 0.0
      %646 = vmatpush1.msra.mxu0 0.0
      %647 = vmatprep.subr.mxu0 0.0
      %648 = vmatpush1.msra.mxu0 0.0
      %649 = vmatprep.subr.mxu0 0.0
      %650 = vmatpush1.msra.mxu0 0.0
      %651 = vmatprep.subr.mxu0 0.0
      %652 = vmatpush1.msra.mxu0 0.0
      %653 = vmatprep.subr.mxu0 0.0
      %654 = vmatpush1.msra.mxu0 0.0
      %655 = vmatprep.subr.mxu0 0.0
      %656 = vmatpush1.msra.mxu0 0.0
      %657 = vmatprep.subr.mxu0 0.0
      %658 = vmatpush1.msra.mxu0 0.0
      %659 = vmatprep.subr.mxu0 0.0
      %660 = vmatpush1.msra.mxu0 0.0
      %661 = vmatprep.subr.mxu0 0.0
      %662 = vmatpush1.msra.mxu0 0.0
      %663 = vmatprep.subr.mxu0 0.0
      %664 = vmatpush1.msra.mxu0 0.0
      %665 = vmatprep.subr.mxu0 0.0
      %666 = vmatpush1.msra.mxu0 0.0
      %667 = vmatprep.subr.mxu0 0.0
      %668 = vmatpush1.msra.mxu0 0.0
      %669 = vmatprep.subr.mxu0 0.0
      %670 = vmatpush1.msra.mxu0 0.0
      %671 = vmatprep.subr.mxu0 0.0
      %672 = vmatpush1.msra.mxu0 0.0
      %673 = vmatprep.subr.mxu0 0.0
      %674 = vmatpush1.msra.mxu0 0.0
      %675 = vmatprep.subr.mxu0 0.0
      %676 = vmatpush1.msra.mxu0 0.0
      %677 = vmatprep.subr.mxu0 0.0
      %678 = vmatpush1.msra.mxu0 0.0
      %679 = vmatprep.subr.mxu0 0.0
      %680 = vmatpush1.msra.mxu0 0.0
      %681 = vmatprep.subr.mxu0 0.0
      %682 = vmatpush1.msra.mxu0 0.0
      %683 = vmatprep.subr.mxu0 0.0
      %684 = vmatpush1.msra.mxu0 0.0
      %685 = vmatprep.mubr.f32.mxu0 0.0
      %686 = vmatmul.mubr.f32.gmra.mrb[0].mxu0 %v619
      %v687 = vpop.f32.mrb[0].mxu0
      %v688 = vadd.f32 %v615, %v687
      %v689 = vpop.f32.mrb[0].mxu0
      %690 = vdwg.mxu0
      %v691 = vxor.u32 %v544, 2147483648
      %v692 = vmul.f32 %v691, 1.442695
      %v693 = vpow.pop %v692
      %v694 = vadd.f32 %v693, 1.0
      %v695 = vrcp.pop %v694
      %v696 = vmul.f32 1.0, %v695
      %v697 = vtanh.pop %v544
      %v698 = vsub.f32 1.0, %v696
      %v699 = vmul.f32 %v696, %v698
      %v700 = vmul.f32 %v699, %v688
      %v701 = vmul.f32 %v697, %v697
      %v702 = vsub.f32 1.0, %v701
      %v703 = vmul.f32 %v702, %v688
      %705 = vrot.lane.b32.xlu0 %v387, 32
      %v706 = vpop.permute.xlu0 %705
      %v708 = vmul.f32 %v696, %v706
      %710 = vrot.lane.b32.xlu0 %v697, 32
      %v711 = vpop.permute.xlu0 %710
      %v713 = vmul.f32 %v696, %v711
      %715 = vrot.lane.b32.xlu0 %v713, 32
      %v716 = vpop.permute.xlu0 %715
      %v718 = vadd.f32 %v708, %v716
      %v719 = vtanh.pop %v718
      %721 = vrot.lane.b32.xlu0 %v719, 32
      %v722 = vpop.permute.xlu0 %721
      %v724 = vmul.f32 %v696, %v722
      %v725 = vmul.f32 %v700, %v706
      %727 = vrot.lane.b32.xlu0 %v388, 32
      %v728 = vpop.permute.xlu0 %727
      %v730 = vmul.f32 %v696, %v728
      %v731 = vadd.f32 %v725, %v730
      %v732 = vmul.f32 %v700, %v711
      %734 = vrot.lane.b32.xlu0 %v732, 32
      %v735 = vpop.permute.xlu0 %734
      %v737 = vadd.f32 %v731, %v735
      %739 = vrot.lane.b32.xlu0 %v703, 32
      %v740 = vpop.permute.xlu0 %739
      %v742 = vmul.f32 %v696, %v740
      %744 = vrot.lane.b32.xlu0 %v742, 32
      %v745 = vpop.permute.xlu0 %744
      %v747 = vadd.f32 %v737, %v745
      %v748 = vmul.f32 %v700, %v722
      %v749 = vmul.f32 %v719, %v719
      %v750 = vsub.f32 1.0, %v749
      %752 = vrot.lane.b32.xlu0 %v750, 32
      %v753 = vpop.permute.xlu0 %752
      %v755 = vmul.f32 %v696, %v753
      %757 = vrot.lane.b32.xlu0 %v747, 32
      %v758 = vpop.permute.xlu0 %757
      %v760 = vmul.f32 %v755, %v758
      %v761 = vadd.f32 %v748, %v760
      %763 = vrot.lane.b32.xlu0 %v724, 64
      %v764 = vpop.permute.xlu0 %763
      %766 = vst.msk [vmem:[#allocation2] sm:$0xff] %vm389, %v764
      %768 = vrot.lane.b32.xlu0 %v761, 64
      %v769 = vpop.permute.xlu0 %768
      %771 = vst.msk [vmem:[#allocation3] sm:$0xff] %vm389, %v769
      %773 = vrot.lane.b32.xlu0 %v718, 96
      %v774 = vpop.permute.xlu0 %773
      %776 = vst.msk [vmem:[#allocation4] sm:$0xff] %vm389, %v774
      %777 = vrot.lane.b32.xlu0 %v747, 96
      %v778 = vpop.permute.xlu0 %777
      %780 = vst.msk [vmem:[#allocation5] sm:$0xff] %vm389, %v778
      %781 = vrot.lane.b32.xlu0 %v724, 96
      %v782 = vpop.permute.xlu0 %781
      %784 = vrot.lane.b32.xlu0 %v718, 32
      %v785 = vpop.permute.xlu0 %784
      %787 = vrot.lane.b32.xlu0 %v747, 64
      %v788 = vpop.permute.xlu0 %787
      %v790 = vsel %vm389, %v769, %v782
      %vm791 = vcmask 523264
      %v792 = vsel %vm791, %v790, %v785
      %vm793 = vcmask 785408
      %v794 = vsel %vm793, %v792, %v788
      %795 = vst [vmem:[%s366] sm:$0xff] %v794
      %p796 = scmp.lt.s32.totalorder %s23, 15
      %s797 = scalar_select %p796, %s23, 15
      %p798 = scmp.lt.s32.totalorder %s22, 0
      %s799 = scalar_select %p798, %s22, 0
      %s800 = sadd.s32 %s799, %s797
      %s801 = smul.addr %s800, 8
      %s802 = scalar_lea.vmem %s7, %s801
      // Predicated region
      $region53: #{cont_lstm_delay_scan.1} parent=47 // pred_check
        %p803 = pneg %p221
      $region54: #{cont_lstm_delay_scan.1} parent=47 // pred_check_branch
        %805 = sbr.rel (%p803) target = $region56
      $region55: #{cont_lstm_delay_scan.1} parent=47 // pred_region
        _
      $region56: #{cont_lstm_delay_scan.1} parent=47 // pred_fallthru
        _
    $region48: #{cont_lstm_delay_scan.1} parent=5 // pred_fallthru
      _
    %p806 = scmp.le.s32.totalorder 2, %s13
    // Predicated region
    $region57: #{cont_lstm_delay_scan.1} parent=5 // pred_check
      %p807 = pneg %p806
    $region58: #{cont_lstm_delay_scan.1} parent=5 // pred_check_branch
      %809 = sbr.rel (%p807) target = $region60
    $region59: #{cont_lstm_delay_scan.1} parent=5 // pred_region
      %s810 = ssub.s32 %s13, 2
      // Predicated region
      $region61: #{cont_lstm_delay_scan.1} parent=59 // pred_check
        %p811 = pneg %p227
      $region62: #{cont_lstm_delay_scan.1} parent=59 // pred_check_branch
        %813 = sbr.rel (%p811) target = $region64
      $region63: #{cont_lstm_delay_scan.1} parent=59 // pred_region
        %p814 = scmp.lt.s32.totalorder %s25, 15
        %s815 = scalar_select %p814, %s25, 15
        %p816 = scmp.lt.s32.totalorder %s24, 0
        %s817 = scalar_select %p816, %s24, 0
        %s818 = sadd.s32 %s817, %s815
        %s819 = smul.addr %s818, 8
        %s820 = scalar_lea.vmem %s7, %s819
      $region64: #{cont_lstm_delay_scan.1} parent=59 // pred_fallthru
        _
    $region60: #{cont_lstm_delay_scan.1} parent=5 // pred_fallthru
      _
  $region6: #{cont_lstm_delay_scan.1} parent=0 // loop_footer
    %s17 = sadd.s32 1, %s13
  $region7: #{cont_lstm_delay_scan.1} parent=0 // loop_footer_branch
    %12 = sbr.rel target = $region3
  $region8: #{cont_lstm_delay_scan.1} parent=0 // loop_exit
    _

</llo_original>
